<compile_context>
chip_gen: v5e
topology: v5e:2x2
jax: 0.10.0
libtpu: 0.0.40
codegen_flags: <defaults>
</compile_context>

<pallas_src>
import functools

import jax
import jax.numpy as jnp
from jax.experimental import pallas as pl
from jax.experimental.pallas import tpu as pltpu


LANE = 128          # lane (last-dim) tile width
SUBLANE_BF16 = 16   # bf16 sublane tile (f32 would be 8); batch pads to this
NUM_TC = 2          # TensorCores/chip on v7x (1 on v5e/v6e -> harmless there)


def _round_up(x, m):
    return (x + m - 1) // m * m


def _cdiv(a, b):
    return (a + b - 1) // b


def _fused_mlp_kernel(*refs, num_layers, num_activations, out_widths):
    """refs = (x_ref, w_0 .. w_{L-1}, b_ref, o_ref).

    x_ref : (tm, in_p)         bf16
    w_i   : (in_p_i, out_p_i)  bf16  (resident: constant index_map)
    b_ref : (L, 1, out_p_max)  f32   (resident)
    o_ref : (tm, out_p_last)   f32

    Per layer: bf16 MXU matmul with f32 accumulation, f32 bias add + ReLU on
    the VPU (hidden under the MXU), then one bf16 recast feeding the next
    matmul.  Intermediates never leave vregs/VMEM.
    """
    x_ref = refs[0]
    w_refs = refs[1:1 + num_layers]
    b_ref = refs[1 + num_layers]
    o_ref = refs[2 + num_layers]

    h = x_ref[...]                                          # (tm, in_p) bf16
    for i in range(num_layers):
        acc = jnp.dot(h, w_refs[i][...],
                      preferred_element_type=jnp.float32)   # f32 accumulate
        acc = acc + b_ref[i][:, :out_widths[i]]             # (1, out_p_i) f32
        # TODO(synk): nn.Dropout() after layer 0 is identity at inference;
        # training-mode dropout (pltpu.prng_seed / prng_random_bits) is not
        # implemented here.
        if i < num_activations:
            acc = jnp.maximum(acc, 0.0)
        # Recast to bf16 between layers so the next matmul is bf16-native;
        # the final layer keeps the f32 accumulator for the store.
        h = acc.astype(jnp.bfloat16) if i + 1 < num_layers else acc
    o_ref[...] = h.astype(o_ref.dtype)


def init_params(key, layer_sizes):
    """PyTorch-style init mimicking _init_weights: W ~ N(0,1), b = 0.

    Kept in PyTorch layout (Out, In) as the source of truth; prepare_params()
    converts to the kernel layout exactly once.
    """
    params = []
    for i in range(len(layer_sizes) - 1):
        key, wk = jax.random.split(key)
        w = jax.random.normal(wk, (layer_sizes[i + 1], layer_sizes[i]),
                              dtype=jnp.float32)
        b = jnp.zeros((layer_sizes[i + 1],), dtype=jnp.float32)
        params.append((w, b))
    return params


def prepare_params(params):
    """One-time hoisted layout pass.

    * Transpose W to (In, Out) so the kernel computes y = x @ W, cast to bf16
      (MXU-native on v5e/v6e/v7x), zero-pad both dims to multiples of 128 so
      every load is lane-dense (no masked vst.msk).
    * Concatenate all biases into a single (L, 1, out_p_max) f32 array
      (fewer input refs); f32 bias adds exactly onto the f32 accumulator.
    Zero-padded columns stay exactly zero through (zero W, zero b, ReLU), so
    slicing the final output recovers the unpadded result.
    """
    weights = []
    out_ws = []
    for (w, _b) in params:
        out_f, in_f = w.shape
        in_p = _round_up(in_f, LANE)
        out_p = _round_up(out_f, LANE)
        w_p = (jnp.zeros((in_p, out_p), jnp.bfloat16)
               .at[:in_f, :out_f].set(w.T.astype(jnp.bfloat16)))
        weights.append(w_p)
        out_ws.append(out_p)
    out_p_max = max(out_ws)
    biases = jnp.zeros((len(params), 1, out_p_max), jnp.float32)
    for i, (_w, b) in enumerate(params):
        biases = biases.at[i, 0, :b.shape[0]].set(b)
    return weights, biases, tuple(out_ws)


def batch_tiling(batch, *, tm_max=512):
    """Pick (tm, padded_batch).

    * tiny batch  -> one 16-row tile (bf16 sublane), single grid step
    * mid batch   -> exactly NUM_TC grid steps so dimension_semantics=
                     ("parallel",) shards across v7x's two TensorCores
    * large batch -> tm_max-row tiles (amortizes ~0.35us/step overhead; 512
                     tiles reach ~85% of DMA roofline vs ~29% at 128)
    """
    b_min = _round_up(max(batch, 1), SUBLANE_BF16)
    if b_min <= SUBLANE_BF16:
        return SUBLANE_BF16, SUBLANE_BF16
    if batch <= NUM_TC * tm_max:
        tm = _round_up(_cdiv(batch, NUM_TC), SUBLANE_BF16)
        return tm, tm * NUM_TC
    return tm_max, _round_up(batch, tm_max)


def pad_input(x, b_p, in_p):
    """Pad + bf16-cast the input once, outside the hot loop."""
    B, in_f = x.shape
    return (jnp.zeros((b_p, in_p), jnp.bfloat16)
            .at[:B, :in_f].set(x.astype(jnp.bfloat16)))


def fused_mlp_forward_padded(x_p, weights, biases, out_widths,
                             num_activations, *, tm):
    """Hot path: one pallas_call on a pre-padded bf16 input; returns the
    padded f32 output (slice only at the API boundary).

    The whole (padded) weight stack stays resident in VMEM across batch tiles.
    Scaling cliff: once the double-buffered bf16 weight stack
    (2 * sum(In_p*Out_p) * 2 bytes) approaches ~48 MiB (v7x has 64 MiB
    physical VMEM vs 128 MiB on v5e/v6e), switch to a standard (M, N, K) grid
    with a VMEM f32 accumulator scratch, K as the trailing "arbitrary" axis
    and pl.when(k==0)/(k==last) init/finalize.
    TODO(synk): mark the resident weight specs pipeline_mode=pl.Buffered(1)
    (a constant index_map never needs a second pipeline buffer) on jax
    versions that accept buffer_count=1; omitted here for portability.
    """
    b_p, in_p = x_p.shape
    num_layers = len(weights)
    out_p_last = weights[-1].shape[1]

    kernel = functools.partial(
        _fused_mlp_kernel,
        num_layers=num_layers,
        num_activations=num_activations,
        out_widths=out_widths,
    )

    in_specs = [pl.BlockSpec((tm, in_p), lambda i: (i, 0))]
    for w in weights:
        # Same block index every grid step -> weights stay VMEM-resident.
        in_specs.append(pl.BlockSpec(w.shape, lambda i: (0, 0)))
    in_specs.append(pl.BlockSpec(biases.shape, lambda i: (0, 0, 0)))

    # Explicit scoped-VMEM limit: resident weights/biases + double-buffered
    # x/out tiles, with headroom; capped at 48 MiB so it also fits v7x.
    w_bytes = sum(int(w.size) * w.dtype.itemsize for w in weights)
    b_bytes = int(biases.size) * biases.dtype.itemsize
    tile_bytes = tm * in_p * 2 + tm * out_p_last * 4
    vmem_needed = 2 * (w_bytes + b_bytes + tile_bytes)
    vmem_limit = int(min(max(2 * vmem_needed, 32 << 20), 48 << 20))

    return pl.pallas_call(
        kernel,
        out_shape=jax.ShapeDtypeStruct((b_p, out_p_last), jnp.float32),
        grid_spec=pl.GridSpec(
            grid=(b_p // tm,),
            in_specs=in_specs,
            out_specs=pl.BlockSpec((tm, out_p_last), lambda i: (i, 0)),
        ),
        compiler_params=pltpu.CompilerParams(
            # Batch tiles are independent -> megacore sharding on v7x.
            dimension_semantics=("parallel",),
            vmem_limit_bytes=vmem_limit,
        ),
    )(x_p, *weights, biases)


def fused_mlp_forward(x, weights, biases, out_widths, out_features,
                      num_activations, *, tm_max=512):
    """API-boundary convenience wrapper: pads once, runs the fused kernel,
    slices once.  For hot loops call pad_input()/fused_mlp_forward_padded()
    directly and keep the padded buffers alive."""
    B = x.shape[0]
    in_p = weights[0].shape[0]
    tm, b_p = batch_tiling(B, tm_max=tm_max)
    x_p = pad_input(x, b_p, in_p)
    out_p = fused_mlp_forward_padded(x_p, weights, biases, out_widths,
                                     num_activations, tm=tm)
    return out_p[:B, :out_features]


if __name__ == "__main__":
    # Shapes consistent with the module:
    #   num_layers=3, layer_sizes=[32, 64, 64, 16],
    #   activation_functions=[ReLU, ReLU]  (last layer: no activation)
    num_layers = 3
    layer_sizes = [32, 64, 64, 16]
    num_activations = 2
    batch = 8

    key = jax.random.PRNGKey(0)
    key, xk = jax.random.split(key)
    x = jax.random.normal(xk, (batch, layer_sizes[0]), dtype=jnp.float32)

    params = init_params(key, layer_sizes)
    weights, biases, out_widths = prepare_params(params)  # one-time layout pass

    # Hot-path usage: pad once outside the loop, run the fused kernel on the
    # padded buffers, slice only at the API boundary.
    tm, b_p = batch_tiling(batch)
    x_p = pad_input(x, b_p, weights[0].shape[0])
    out_p = fused_mlp_forward_padded(x_p, weights, biases, out_widths,
                                     num_activations, tm=tm)
    out_p = jax.block_until_ready(out_p)
    out = out_p[:batch, :layer_sizes[-1]]

    # Reference: same bf16-weight / f32-accumulate path in plain JAX
    # (inference-mode dropout = identity).
    ref = x.astype(jnp.bfloat16)
    for i, (w, b) in enumerate(params):
        acc = jnp.dot(ref, w.T.astype(jnp.bfloat16),
                      preferred_element_type=jnp.float32) + b
        if i < num_activations:
            acc = jnp.maximum(acc, 0.0)
        ref = acc.astype(jnp.bfloat16) if i + 1 < len(params) else acc

    assert out.shape == (batch, layer_sizes[-1])
    assert jnp.allclose(out, ref, atol=1e-2, rtol=1e-2), (
        float(jnp.max(jnp.abs(out - ref))))

    print("KERNEL_OK")
</pallas_src>

<mosaic_0001>
module attributes {stable_mosaic.version = 11 : i64} {
  func.func @_fused_mlp_kernel(%arg0: i32, %arg1: memref<16x128xbf16, #tpu.memory_space<vmem>>, %arg2: memref<128x128xbf16, #tpu.memory_space<vmem>>, %arg3: memref<128x128xbf16, #tpu.memory_space<vmem>>, %arg4: memref<128x128xbf16, #tpu.memory_space<vmem>>, %arg5: memref<3x1x128xf32, #tpu.memory_space<vmem>>, %arg6: memref<16x128xf32, #tpu.memory_space<vmem>>) attributes {dimension_semantics = [#tpu.dimension_semantics<parallel>], iteration_bounds = array<i64: 1>, scalar_prefetch = 0 : i64, scratch_operands = 0 : i64, tpu.core_type = #tpu.core_type<tc>, window_params = [{transform_indices = @transform_0, window_bounds = array<i64: 16, 128>}, {pipeline_mode = #tpu.pipeline_mode<synchronous>, transform_indices = @transform_1, window_bounds = array<i64: 128, 128>}, {pipeline_mode = #tpu.pipeline_mode<synchronous>, transform_indices = @transform_2, window_bounds = array<i64: 128, 128>}, {pipeline_mode = #tpu.pipeline_mode<synchronous>, transform_indices = @transform_3, window_bounds = array<i64: 128, 128>}, {pipeline_mode = #tpu.pipeline_mode<synchronous>, transform_indices = @transform_4, window_bounds = array<i64: 3, 1, 128>}, {transform_indices = @transform_5, window_bounds = array<i64: 16, 128>}]} {
    %c0 = arith.constant 0 : index
    %c0_0 = arith.constant 0 : index
    %0 = vector.load %arg1[%c0, %c0_0] : memref<16x128xbf16, #tpu.memory_space<vmem>>, vector<16x128xbf16>
    %c0_1 = arith.constant 0 : index
    %c0_2 = arith.constant 0 : index
    %1 = vector.load %arg2[%c0_1, %c0_2] : memref<128x128xbf16, #tpu.memory_space<vmem>>, vector<128x128xbf16>
    %cst = arith.constant dense<0.000000e+00> : vector<16x128xf32>
    %2 = tpu.matmul %0, %1, %cst {dimension_numbers = #tpu.dot_dimension_numbers<[1], [0], [0], [1], [0, 0, 1, 1], [], []>} : vector<16x128xbf16>, vector<128x128xbf16>, vector<16x128xf32> -> vector<16x128xf32>
    %c0_3 = arith.constant 0 : index
    %c0_4 = arith.constant 0 : index
    %c0_5 = arith.constant 0 : index
    %3 = vector.load %arg5[%c0_3, %c0_4, %c0_5] : memref<3x1x128xf32, #tpu.memory_space<vmem>>, vector<1x1x128xf32>
    %4 = vector.shape_cast %3 : vector<1x1x128xf32> to vector<1x128xf32>
    %5 = vector.broadcast %4 : vector<1x128xf32> to vector<16x128xf32>
    %6 = arith.addf %2, %5 : vector<16x128xf32>
    %cst_6 = arith.constant 0.000000e+00 : f32
    %7 = vector.broadcast %cst_6 : f32 to vector<16x128xf32>
    %8 = arith.maximumf %6, %7 : vector<16x128xf32>
    %9 = arith.truncf %8 : vector<16x128xf32> to vector<16x128xbf16>
    %c0_7 = arith.constant 0 : index
    %c0_8 = arith.constant 0 : index
    %10 = vector.load %arg3[%c0_7, %c0_8] : memref<128x128xbf16, #tpu.memory_space<vmem>>, vector<128x128xbf16>
    %cst_9 = arith.constant dense<0.000000e+00> : vector<16x128xf32>
    %11 = tpu.matmul %9, %10, %cst_9 {dimension_numbers = #tpu.dot_dimension_numbers<[1], [0], [0], [1], [0, 0, 1, 1], [], []>} : vector<16x128xbf16>, vector<128x128xbf16>, vector<16x128xf32> -> vector<16x128xf32>
    %c1 = arith.constant 1 : index
    %c0_10 = arith.constant 0 : index
    %c0_11 = arith.constant 0 : index
    %12 = vector.load %arg5[%c1, %c0_10, %c0_11] : memref<3x1x128xf32, #tpu.memory_space<vmem>>, vector<1x1x128xf32>
    %13 = vector.shape_cast %12 : vector<1x1x128xf32> to vector<1x128xf32>
    %14 = vector.broadcast %13 : vector<1x128xf32> to vector<16x128xf32>
    %15 = arith.addf %11, %14 : vector<16x128xf32>
    %cst_12 = arith.constant 0.000000e+00 : f32
    %16 = vector.broadcast %cst_12 : f32 to vector<16x128xf32>
    %17 = arith.maximumf %15, %16 : vector<16x128xf32>
    %18 = arith.truncf %17 : vector<16x128xf32> to vector<16x128xbf16>
    %c0_13 = arith.constant 0 : index
    %c0_14 = arith.constant 0 : index
    %19 = vector.load %arg4[%c0_13, %c0_14] : memref<128x128xbf16, #tpu.memory_space<vmem>>, vector<128x128xbf16>
    %cst_15 = arith.constant dense<0.000000e+00> : vector<16x128xf32>
    %20 = tpu.matmul %18, %19, %cst_15 {dimension_numbers = #tpu.dot_dimension_numbers<[1], [0], [0], [1], [0, 0, 1, 1], [], []>} : vector<16x128xbf16>, vector<128x128xbf16>, vector<16x128xf32> -> vector<16x128xf32>
    %c2 = arith.constant 2 : index
    %c0_16 = arith.constant 0 : index
    %c0_17 = arith.constant 0 : index
    %21 = vector.load %arg5[%c2, %c0_16, %c0_17] : memref<3x1x128xf32, #tpu.memory_space<vmem>>, vector<1x1x128xf32>
    %22 = vector.shape_cast %21 : vector<1x1x128xf32> to vector<1x128xf32>
    %23 = vector.broadcast %22 : vector<1x128xf32> to vector<16x128xf32>
    %24 = arith.addf %20, %23 : vector<16x128xf32>
    %c0_18 = arith.constant 0 : index
    %c0_19 = arith.constant 0 : index
    %25 = vector.load %arg6[%c0_18, %c0_19] : memref<16x128xf32, #tpu.memory_space<vmem>>, vector<16x128xf32>
    tpu.vector_store %arg6[%c0_18, %c0_19], %24 {strides = array<i32>} : memref<16x128xf32, #tpu.memory_space<vmem>>, vector<16x128xf32>,
    return
  }
  func.func @transform_0(%arg0: i32) -> (i32, i32) {
    %c0_i32 = arith.constant 0 : i32
    %c0_i32_0 = arith.constant 0 : i32
    return %arg0, %c0_i32 : i32, i32
  }
  func.func @transform_1(%arg0: i32) -> (i32, i32) {
    %c0_i32 = arith.constant 0 : i32
    %c0_i32_0 = arith.constant 0 : i32
    %c0_i32_1 = arith.constant 0 : i32
    return %c0_i32, %c0_i32_0 : i32, i32
  }
  func.func @transform_2(%arg0: i32) -> (i32, i32) {
    %c0_i32 = arith.constant 0 : i32
    %c0_i32_0 = arith.constant 0 : i32
    %c0_i32_1 = arith.constant 0 : i32
    return %c0_i32, %c0_i32_0 : i32, i32
  }
  func.func @transform_3(%arg0: i32) -> (i32, i32) {
    %c0_i32 = arith.constant 0 : i32
    %c0_i32_0 = arith.constant 0 : i32
    %c0_i32_1 = arith.constant 0 : i32
    return %c0_i32, %c0_i32_0 : i32, i32
  }
  func.func @transform_4(%arg0: i32) -> (i32, i32, i32) {
    %c0_i32 = arith.constant 0 : i32
    %c0_i32_0 = arith.constant 0 : i32
    %c0_i32_1 = arith.constant 0 : i32
    %c0_i32_2 = arith.constant 0 : i32
    return %c0_i32, %c0_i32_0, %c0_i32_1 : i32, i32, i32
  }
  func.func @transform_5(%arg0: i32) -> (i32, i32) {
    %c0_i32 = arith.constant 0 : i32
    %c0_i32_0 = arith.constant 0 : i32
    return %arg0, %c0_i32 : i32, i32
  }
}

</mosaic_0001>

<llo_original>
// kernel: tpu_custom_call.1
$region0: #{tpu_custom_call.1}
  #allocation0 [shape = 'u32[]', space=smem, size = 0x4, offset = 0x4, fixed_abs, tag = 'smem constant byte address 0x4 - core index']
  #allocation1 [shape = 'u32[72,128]{1,0:T(1,128)}', space=vmem, size = 0x9000, scoped, tag = 'internal scratch']
  %s0 = inlined_call_operand.hbm [shape: bf16[16,128], index: 0, kind: input, shape index: {}]
  %s1 = inlined_call_operand.hbm [shape: bf16[128,128], index: 1, kind: input, shape index: {}]
  %s2 = inlined_call_operand.hbm [shape: bf16[128,128], index: 2, kind: input, shape index: {}]
  %s3 = inlined_call_operand.hbm [shape: bf16[128,128], index: 3, kind: input, shape index: {}]
  %s4 = inlined_call_operand.vmem [shape: f32[3,1,128], index: 4, kind: input, shape index: {}]
  %s5 = inlined_call_operand.hbm [shape: f32[16,128], index: 5, kind: output, shape index: {}]
  %s6 = sld [smem:[#allocation0]]
  $region46: #{tpu_custom_call.1} parent=0
    _
  %s8 = ssub.s32 1, %s6
  %s9 = scalar_select 0, %s8, %s6
  $region1: #{tpu_custom_call.1} parent=0
    #allocation2 [shape = 'u8[4096]{0}', space=vmem, size = 0x1000, scoped, tag = 'input window, operand 0, single buffered']
    #allocation3 [shape = 's32[1]{0}', space=sflag, size = 0x4, scoped, tag = 'scoped memory for tpu_custom_call.1']
    #allocation4 [shape = 's32[1]{0}', space=sflag, size = 0x4, scoped, tag = 'scoped memory for tpu_custom_call.1']
    #allocation5 [shape = 'u8[32768]{0}', space=vmem, size = 0x8000, scoped, tag = 'input window, operand 1, single buffered']
    #allocation6 [shape = 's32[1]{0}', space=sflag, size = 0x4, scoped, tag = 'scoped memory for tpu_custom_call.1']
    #allocation7 [shape = 'u8[32768]{0}', space=vmem, size = 0x8000, scoped, tag = 'input window, operand 2, single buffered']
    #allocation8 [shape = 'u8[32768]{0}', space=vmem, size = 0x8000, scoped, tag = 'input window, operand 3, single buffered']
    #allocation9 [shape = 's32[1]{0}', space=sflag, size = 0x4, scoped, tag = 'scoped memory for tpu_custom_call.1']
    #allocation10 [shape = 'u8[8192]{0}', space=vmem, size = 0x2000, scoped, tag = 'output window, operand 0, single buffered']
    %10 = vsyncpa [#allocation3], 0
    %11 = vsyncpa [#allocation6], 0
    %12 = vsyncpa [#allocation9], 0
    %13 = vsyncpa [#allocation4], 0
    // Predicated region
    $region2: #{tpu_custom_call.1} parent=1 // pred_check
      _
    $region3: #{tpu_custom_call.1} parent=1 // pred_check_branch
      %15 = sbr.rel (0) target = $region5
    $region4: #{tpu_custom_call.1} parent=1 // pred_region
      %17 = vsyncadd [#allocation3], 0
      %s18 = sshll.u32 %s0, 4
      %s19 = int_to_ptr.hbm [resolvable:$true] %s18
      %s20 = sshll.u32 [#allocation2], 4
      %s21 = int_to_ptr.vmem [resolvable:$true] %s20
      %26 = dma.hbm_to_vmem [thread:$0]  %s19, 128, %s21, [#allocation3], 64, 64, 4
    $region5: #{tpu_custom_call.1} parent=1 // pred_fallthru
      _
    // Predicated region
    $region6: #{tpu_custom_call.1} parent=1 // pred_check
      _
    $region7: #{tpu_custom_call.1} parent=1 // pred_check_branch
      %28 = sbr.rel (0) target = $region9
    $region8: #{tpu_custom_call.1} parent=1 // pred_region
      %30 = vsyncadd [#allocation6], 0
      %s31 = sshll.u32 %s1, 4
      %s32 = int_to_ptr.hbm [resolvable:$true] %s31
      %s33 = sshll.u32 [#allocation5], 4
      %s34 = int_to_ptr.vmem [resolvable:$true] %s33
      %39 = dma.hbm_to_vmem [thread:$0]  %s32, 1024, %s34, [#allocation6], 64, 64, 4
    $region9: #{tpu_custom_call.1} parent=1 // pred_fallthru
      _
    // Predicated region
    $region10: #{tpu_custom_call.1} parent=1 // pred_check
      _
    $region11: #{tpu_custom_call.1} parent=1 // pred_check_branch
      %41 = sbr.rel (0) target = $region13
    $region12: #{tpu_custom_call.1} parent=1 // pred_region
      %43 = vsyncadd [#allocation6], 0
      %s44 = sshll.u32 %s2, 4
      %s45 = int_to_ptr.hbm [resolvable:$true] %s44
      %s46 = sshll.u32 [#allocation7], 4
      %s47 = int_to_ptr.vmem [resolvable:$true] %s46
      %52 = dma.hbm_to_vmem [thread:$0]  %s45, 1024, %s47, [#allocation6], 64, 64, 4
    $region13: #{tpu_custom_call.1} parent=1 // pred_fallthru
      _
    // Predicated region
    $region14: #{tpu_custom_call.1} parent=1 // pred_check
      _
    $region15: #{tpu_custom_call.1} parent=1 // pred_check_branch
      %54 = sbr.rel (0) target = $region17
    $region16: #{tpu_custom_call.1} parent=1 // pred_region
      %56 = vsyncadd [#allocation9], 0
      %s57 = sshll.u32 %s3, 4
      %s58 = int_to_ptr.hbm [resolvable:$true] %s57
      %s59 = sshll.u32 [#allocation8], 4
      %s60 = int_to_ptr.vmem [resolvable:$true] %s59
      %65 = dma.hbm_to_vmem [thread:$0]  %s58, 1024, %s60, [#allocation9], 64, 64, 4
    $region17: #{tpu_custom_call.1} parent=1 // pred_fallthru
      _
    // Predicated region
    $region18: #{tpu_custom_call.1} parent=1 // pred_check
      _
    $region19: #{tpu_custom_call.1} parent=1 // pred_check_branch
      %67 = sbr.rel (0) target = $region21
    $region20: #{tpu_custom_call.1} parent=1 // pred_region
      _
    $region21: #{tpu_custom_call.1} parent=1 // pred_fallthru
      _
    // Predicated region
    $region22: #{tpu_custom_call.1} parent=1 // pred_check
      _
    $region23: #{tpu_custom_call.1} parent=1 // pred_check_branch
      %69 = sbr.rel (0) target = $region25
    $region24: #{tpu_custom_call.1} parent=1 // pred_region
      %71 = dma.done [#allocation3], 128
    $region25: #{tpu_custom_call.1} parent=1 // pred_fallthru
      _
    // Predicated region
    $region26: #{tpu_custom_call.1} parent=1 // pred_check
      _
    $region27: #{tpu_custom_call.1} parent=1 // pred_check_branch
      %73 = sbr.rel (0) target = $region29
    $region28: #{tpu_custom_call.1} parent=1 // pred_region
      %75 = dma.done [#allocation6], 1024
    $region29: #{tpu_custom_call.1} parent=1 // pred_fallthru
      _
    // Predicated region
    $region30: #{tpu_custom_call.1} parent=1 // pred_check
      _
    $region31: #{tpu_custom_call.1} parent=1 // pred_check_branch
      %77 = sbr.rel (0) target = $region33
    $region32: #{tpu_custom_call.1} parent=1 // pred_region
      %79 = dma.done [#allocation6], 1024
    $region33: #{tpu_custom_call.1} parent=1 // pred_fallthru
      _
    // Predicated region
    $region34: #{tpu_custom_call.1} parent=1 // pred_check
      _
    $region35: #{tpu_custom_call.1} parent=1 // pred_check_branch
      %81 = sbr.rel (0) target = $region37
    $region36: #{tpu_custom_call.1} parent=1 // pred_region
      %83 = dma.done [#allocation9], 1024
    $region37: #{tpu_custom_call.1} parent=1 // pred_fallthru
      _
    %v84 = vld [vmem:[#allocation2] sm:$0xf]
    %v85 = vld [vmem:[#allocation2 + $0x4] sm:$0xf]
    %v86 = vld [vmem:[#allocation5] sm:$0xf]
    %v87 = vld [vmem:[#allocation5 + $0x4] sm:$0xf]
    %v88 = vld [vmem:[#allocation5 + $0x8] sm:$0xf]
    %v89 = vld [vmem:[#allocation5 + $0xc] sm:$0xf]
    %v90 = vld [vmem:[#allocation5 + $0x10] sm:$0xf]
    %v91 = vld [vmem:[#allocation5 + $0x14] sm:$0xf]
    %v92 = vld [vmem:[#allocation5 + $0x18] sm:$0xf]
    %v93 = vld [vmem:[#allocation5 + $0x1c] sm:$0xf]
    %v94 = vld [vmem:[#allocation5 + $0x20] sm:$0xf]
    %v95 = vld [vmem:[#allocation5 + $0x24] sm:$0xf]
    %v96 = vld [vmem:[#allocation5 + $0x28] sm:$0xf]
    %v97 = vld [vmem:[#allocation5 + $0x2c] sm:$0xf]
    %v98 = vld [vmem:[#allocation5 + $0x30] sm:$0xf]
    %v99 = vld [vmem:[#allocation5 + $0x34] sm:$0xf]
    %v100 = vld [vmem:[#allocation5 + $0x38] sm:$0xf]
    %v101 = vld [vmem:[#allocation5 + $0x3c] sm:$0xf]
    %v102 = vld [vmem:[%s4] sm:$0x1]
    %v104 = vperm.slane %v102, 0
    %v108 = vunpack.c.l.b16 %v84
    %v109 = vunpack.c.l.b16 %v85
    %v110 = vpack.c.b16 %v109, %v108
    %v128 = vunpack.c.l.b16 %v86
    %v129 = vunpack.c.l.b16 %v87
    %v130 = vunpack.c.l.b16 %v88
    %v131 = vunpack.c.l.b16 %v89
    %v132 = vunpack.c.l.b16 %v90
    %v133 = vunpack.c.l.b16 %v91
    %v134 = vunpack.c.l.b16 %v92
    %v135 = vunpack.c.l.b16 %v93
    %v136 = vunpack.c.l.b16 %v94
    %v137 = vunpack.c.l.b16 %v95
    %v138 = vunpack.c.l.b16 %v96
    %v139 = vunpack.c.l.b16 %v97
    %v140 = vunpack.c.l.b16 %v98
    %v141 = vunpack.c.l.b16 %v99
    %v142 = vunpack.c.l.b16 %v100
    %v143 = vunpack.c.l.b16 %v101
    %v144 = vpack.c.b16 %v129, %v128
    %v145 = vpack.c.b16 %v131, %v130
    %v146 = vpack.c.b16 %v133, %v132
    %v147 = vpack.c.b16 %v135, %v134
    %v148 = vpack.c.b16 %v137, %v136
    %v149 = vpack.c.b16 %v139, %v138
    %v150 = vpack.c.b16 %v141, %v140
    %v151 = vpack.c.b16 %v143, %v142
    %160 = vmatpush.bf16.msra.mxu0 %v151
    %161 = vmatpush.bf16.msra.mxu0 %v150
    %162 = vmatpush.bf16.msra.mxu0 %v149
    %163 = vmatpush.bf16.msra.mxu0 %v148
    %164 = vmatpush.bf16.msra.mxu0 %v147
    %165 = vmatpush.bf16.msra.mxu0 %v146
    %166 = vmatpush.bf16.msra.mxu0 %v145
    %167 = vmatpush.bf16.msra.mxu0 %v144
    %168 = vmatmul.bf16.gmra.mxu0 %v110
    %v169 = vpop.f32.mrf.mxu0
    %v170 = vadd.f32 %v104, %v169
    %v171 = vpop.f32.mrf.mxu0
    %v172 = vadd.f32 %v104, %v171
    %173 = vdwg.mxu0
    %v174 = vmax.f32 %v170, 0.0
    %v175 = vmax.f32 %v172, 0.0
    %v176 = vpack.c.bf16 %v175, %v174
    %v177 = vld [vmem:[#allocation7] sm:$0xf]
    %v178 = vld [vmem:[#allocation7 + $0x4] sm:$0xf]
    %v179 = vld [vmem:[#allocation7 + $0x8] sm:$0xf]
    %v180 = vld [vmem:[#allocation7 + $0xc] sm:$0xf]
    %v181 = vld [vmem:[#allocation7 + $0x10] sm:$0xf]
    %v182 = vld [vmem:[#allocation7 + $0x14] sm:$0xf]
    %v183 = vld [vmem:[#allocation7 + $0x18] sm:$0xf]
    %v184 = vld [vmem:[#allocation7 + $0x1c] sm:$0xf]
    %v185 = vld [vmem:[#allocation7 + $0x20] sm:$0xf]
    %v186 = vld [vmem:[#allocation7 + $0x24] sm:$0xf]
    %v187 = vld [vmem:[#allocation7 + $0x28] sm:$0xf]
    %v188 = vld [vmem:[#allocation7 + $0x2c] sm:$0xf]
    %v189 = vld [vmem:[#allocation7 + $0x30] sm:$0xf]
    %v190 = vld [vmem:[#allocation7 + $0x34] sm:$0xf]
    %v191 = vld [vmem:[#allocation7 + $0x38] sm:$0xf]
    %v192 = vld [vmem:[#allocation7 + $0x3c] sm:$0xf]
    %s193 = scalar_lea.vmem %s4, 1
    %v194 = vld [vmem:[%s193] sm:$0x1]
    %v196 = vperm.slane %v194, 0
    %v214 = vunpack.c.l.b16 %v177
    %v215 = vunpack.c.l.b16 %v178
    %v216 = vunpack.c.l.b16 %v179
    %v217 = vunpack.c.l.b16 %v180
    %v218 = vunpack.c.l.b16 %v181
    %v219 = vunpack.c.l.b16 %v182
    %v220 = vunpack.c.l.b16 %v183
    %v221 = vunpack.c.l.b16 %v184
    %v222 = vunpack.c.l.b16 %v185
    %v223 = vunpack.c.l.b16 %v186
    %v224 = vunpack.c.l.b16 %v187
    %v225 = vunpack.c.l.b16 %v188
    %v226 = vunpack.c.l.b16 %v189
    %v227 = vunpack.c.l.b16 %v190
    %v228 = vunpack.c.l.b16 %v191
    %v229 = vunpack.c.l.b16 %v192
    %v230 = vpack.c.b16 %v215, %v214
    %v231 = vpack.c.b16 %v217, %v216
    %v232 = vpack.c.b16 %v219, %v218
    %v233 = vpack.c.b16 %v221, %v220
    %v234 = vpack.c.b16 %v223, %v222
    %v235 = vpack.c.b16 %v225, %v224
    %v236 = vpack.c.b16 %v227, %v226
    %v237 = vpack.c.b16 %v229, %v228
    %246 = vmatpush.bf16.msra.mxu0 %v237
    %247 = vmatpush.bf16.msra.mxu0 %v236
    %248 = vmatpush.bf16.msra.mxu0 %v235
    %249 = vmatpush.bf16.msra.mxu0 %v234
    %250 = vmatpush.bf16.msra.mxu0 %v233
    %251 = vmatpush.bf16.msra.mxu0 %v232
    %252 = vmatpush.bf16.msra.mxu0 %v231
    %253 = vmatpush.bf16.msra.mxu0 %v230
    %254 = vmatmul.bf16.gmra.mxu0 %v176
    %v255 = vpop.f32.mrf.mxu0
    %v256 = vadd.f32 %v196, %v255
    %v257 = vpop.f32.mrf.mxu0
    %v258 = vadd.f32 %v196, %v257
    %259 = vdwg.mxu0
    %v260 = vmax.f32 %v256, 0.0
    %v261 = vmax.f32 %v258, 0.0
    %v262 = vpack.c.bf16 %v261, %v260
    %v263 = vld [vmem:[#allocation8] sm:$0xf]
    %v264 = vld [vmem:[#allocation8 + $0x4] sm:$0xf]
    %v265 = vld [vmem:[#allocation8 + $0x8] sm:$0xf]
    %v266 = vld [vmem:[#allocation8 + $0xc] sm:$0xf]
    %v267 = vld [vmem:[#allocation8 + $0x10] sm:$0xf]
    %v268 = vld [vmem:[#allocation8 + $0x14] sm:$0xf]
    %v269 = vld [vmem:[#allocation8 + $0x18] sm:$0xf]
    %v270 = vld [vmem:[#allocation8 + $0x1c] sm:$0xf]
    %v271 = vld [vmem:[#allocation8 + $0x20] sm:$0xf]
    %v272 = vld [vmem:[#allocation8 + $0x24] sm:$0xf]
    %v273 = vld [vmem:[#allocation8 + $0x28] sm:$0xf]
    %v274 = vld [vmem:[#allocation8 + $0x2c] sm:$0xf]
    %v275 = vld [vmem:[#allocation8 + $0x30] sm:$0xf]
    %v276 = vld [vmem:[#allocation8 + $0x34] sm:$0xf]
    %v277 = vld [vmem:[#allocation8 + $0x38] sm:$0xf]
    %v278 = vld [vmem:[#allocation8 + $0x3c] sm:$0xf]
    %s279 = scalar_lea.vmem %s4, 2
    %v280 = vld [vmem:[%s279] sm:$0x1]
    %v282 = vperm.slane %v280, 0
    %v300 = vunpack.c.l.b16 %v263
    %v301 = vunpack.c.l.b16 %v264
    %v302 = vunpack.c.l.b16 %v265
    %v303 = vunpack.c.l.b16 %v266
    %v304 = vunpack.c.l.b16 %v267
    %v305 = vunpack.c.l.b16 %v268
    %v306 = vunpack.c.l.b16 %v269
    %v307 = vunpack.c.l.b16 %v270
    %v308 = vunpack.c.l.b16 %v271
    %v309 = vunpack.c.l.b16 %v272
    %v310 = vunpack.c.l.b16 %v273
    %v311 = vunpack.c.l.b16 %v274
    %v312 = vunpack.c.l.b16 %v275
    %v313 = vunpack.c.l.b16 %v276
    %v314 = vunpack.c.l.b16 %v277
    %v315 = vunpack.c.l.b16 %v278
    %v316 = vpack.c.b16 %v301, %v300
    %v317 = vpack.c.b16 %v303, %v302
    %v318 = vpack.c.b16 %v305, %v304
    %v319 = vpack.c.b16 %v307, %v306
    %v320 = vpack.c.b16 %v309, %v308
    %v321 = vpack.c.b16 %v311, %v310
    %v322 = vpack.c.b16 %v313, %v312
    %v323 = vpack.c.b16 %v315, %v314
    %332 = vmatpush.bf16.msra.mxu0 %v323
    %333 = vmatpush.bf16.msra.mxu0 %v322
    %334 = vmatpush.bf16.msra.mxu0 %v321
    %335 = vmatpush.bf16.msra.mxu0 %v320
    %336 = vmatpush.bf16.msra.mxu0 %v319
    %337 = vmatpush.bf16.msra.mxu0 %v318
    %338 = vmatpush.bf16.msra.mxu0 %v317
    %339 = vmatpush.bf16.msra.mxu0 %v316
    %340 = vmatmul.bf16.gmra.mxu0 %v262
    %v341 = vpop.f32.mrf.mxu0
    %v342 = vadd.f32 %v282, %v341
    %v343 = vpop.f32.mrf.mxu0
    %v344 = vadd.f32 %v282, %v343
    %345 = vdwg.mxu0
    %346 = vst [vmem:[#allocation10] sm:$0xff] %v342
    %347 = vst [vmem:[#allocation10 + $0x8] sm:$0xff] %v344
    // Predicated region
    $region38: #{tpu_custom_call.1} parent=1 // pred_check
      _
    $region39: #{tpu_custom_call.1} parent=1 // pred_check_branch
      %349 = sbr.rel (0) target = $region41
    $region40: #{tpu_custom_call.1} parent=1 // pred_region
      %351 = vsyncadd [#allocation4], 0
      %s352 = sshll.u32 [#allocation10], 4
      %s353 = int_to_ptr.vmem [resolvable:$true] %s352
      %s354 = sshll.u32 %s5, 4
      %s355 = int_to_ptr.hbm [resolvable:$true] %s354
      %360 = dma.vmem_to_hbm [thread:$0]  %s353, 256, %s355, [#allocation4], 128, 128, 8
    $region41: #{tpu_custom_call.1} parent=1 // pred_fallthru
      _
    // Predicated region
    $region42: #{tpu_custom_call.1} parent=1 // pred_check
      _
    $region43: #{tpu_custom_call.1} parent=1 // pred_check_branch
      %362 = sbr.rel (0) target = $region45
    $region44: #{tpu_custom_call.1} parent=1 // pred_region
      %364 = dma.done [#allocation4], 256
    $region45: #{tpu_custom_call.1} parent=1 // pred_fallthru
      _
    %365 = vsyncpa [#allocation3], 1
    %366 = vsyncpa [#allocation6], 1
    %367 = vsyncpa [#allocation9], 1
    %368 = vsyncpa [#allocation4], 1

</llo_original>
